<compile_context>
chip_gen: v5e
topology: v5e:2x2
jax: 0.10.0
libtpu: 0.0.40
codegen_flags: <defaults>
</compile_context>

<pallas_src>
import numpy as np

import jax
import jax.numpy as jnp
from jax import lax
from jax.experimental import pallas as pl
from jax.experimental.pallas import tpu as pltpu


# ----------------------------------------------------------------------------
# Fused kernel: rebuild the (H, TW) trend for this time tile and stream-add it.
# ----------------------------------------------------------------------------
def exp_trend_kernel(gain_ref, start_ref, length_ref, scale_ref, x_ref, o_ref):
    # gain/start/length/scale: (H, 1); x/o: (TB, H, TW)
    h = gain_ref.shape[0]
    tw = x_ref.shape[2]
    w_off = pl.program_id(1) * tw                              # time offset of this tile
    col = w_off + lax.broadcasted_iota(jnp.int32, (h, tw), 1)  # absolute time index
    start = start_ref[...]                                     # (H, 1) int32
    length = length_ref[...]                                   # (H, 1) int32 (>= 1)
    rel = col - start
    in_win = (rel >= 0) & (rel < length)
    # Clamp rel into [0, length) before exp so out-of-window columns never overflow;
    # gain already carries the selection mask (0 on unselected rows).
    rel_c = jnp.minimum(jnp.maximum(rel, 0), length - 1).astype(jnp.float32)
    trend = gain_ref[...] * (jnp.exp(rel_c * scale_ref[...]) - 1.0)
    add = jnp.where(in_win, trend, jnp.float32(0.0)).astype(x_ref.dtype)
    o_ref[...] = x_ref[...] + add[None]                        # broadcast over batch tile


# ----------------------------------------------------------------------------
# Tiling / VMEM policy.
# ----------------------------------------------------------------------------
def _vmem_limit_bytes():
    """Generation-aware scoped-VMEM limit: ~75% of physical, capped at 100 MiB."""
    cap = 64 << 20  # conservative fallback (v7x physical VMEM per TC)
    try:
        info = pltpu.get_tpu_info()
        cap = int(getattr(info, "vmem_capacity_bytes", cap))
    except Exception:
        pass
    return int(min(100 << 20, cap * 3 // 4))  # 48 MiB on v7x, 96 MiB on v5e/v6e


def _pick_tiles(b, h, w, elem_bytes, vmem_limit, target_bytes=8 << 20):
    """Pick (batch_tile, w_tile): ~8 MiB lane-dense blocks, even batch-step count."""
    # in + out blocks, double-buffered -> 4 live big buffers; keep ~20% headroom.
    block_budget = min(target_bytes, (vmem_limit * 4 // 5) // 4)

    # Time tile: full W when it fits (or W not lane-aligned); else a multiple of 128.
    if h * w * elem_bytes <= block_budget or w % 128 != 0:
        tw = w
    else:
        tw = (block_budget // (h * elem_bytes)) // 128 * 128
        tw = int(min(max(tw, 128), w))

    tb = max(1, block_budget // (h * tw * elem_bytes))
    tb = min(tb, b)

    # Prefer an even number of batch steps (balances v7x's 2 TensorCores).
    if b >= 2:
        nb = -(-b // tb)
        if nb % 2 == 1:
            tb = -(-b // (nb + 1))
    return int(max(tb, 1)), int(tw)


# ----------------------------------------------------------------------------
# Host wrapper.
# ----------------------------------------------------------------------------
def exponential_trend_pallas(x, gain_eff, start, length, scale, *,
                             batch_tile=None, w_tile=None, donate=False):
    """x: (B, H, W). Per-sensor params: (H,) arrays (gain folded with selection mask)."""
    B, H, W = x.shape
    vmem_limit = _vmem_limit_bytes()
    tb, tw = _pick_tiles(B, H, W, x.dtype.itemsize, vmem_limit)
    if batch_tile is not None:
        tb = int(batch_tile)
    if w_tile is not None:
        tw = int(w_tile)
    grid = (pl.cdiv(B, tb), pl.cdiv(W, tw))
    nb = grid[0]

    # Advisory: the hot path is a pure HBM-bound streaming add; trend exps are per block.
    cost = pl.CostEstimate(
        flops=2 * B * H * W,
        transcendentals=nb * H * W,
        bytes_accessed=2 * B * H * W * x.dtype.itemsize + 4 * H * 4,
    )

    param_spec = pl.BlockSpec((H, 1), lambda b, w: (0, 0))  # tiny, resident every step
    data_spec = pl.BlockSpec((tb, H, tw), lambda b, w: (b, 0, w))

    kwargs = {}
    if donate:
        # In-place augmentation: output aliases x (operand index 4), avoiding a second
        # B*H*W HBM buffer when the caller donates x under jit.
        kwargs["input_output_aliases"] = {4: 0}

    # Note: H not a multiple of 8 wastes sublanes in every vreg/DMA; callers with odd H
    # on a bandwidth-critical path should pad H to a multiple of 8.
    return pl.pallas_call(
        exp_trend_kernel,
        out_shape=jax.ShapeDtypeStruct((B, H, W), x.dtype),
        grid_spec=pltpu.PrefetchScalarGridSpec(
            num_scalar_prefetch=0,
            grid=grid,
            in_specs=[param_spec, param_spec, param_spec, param_spec, data_spec],
            out_specs=data_spec,
        ),
        compiler_params=pltpu.CompilerParams(
            dimension_semantics=("parallel", "parallel"),
            vmem_limit_bytes=vmem_limit,
        ),
        cost_estimate=cost,
        **kwargs,
    )(
        gain_eff.astype(jnp.float32).reshape(H, 1),
        start.astype(jnp.int32).reshape(H, 1),
        length.astype(jnp.int32).reshape(H, 1),
        scale.astype(jnp.float32).reshape(H, 1),
        x,
    )


# ----------------------------------------------------------------------------
# Deterministic host-side reproduction of the torch module's randomness.
# (Pure host glue: everything is materialized to NumPy, never traced.)
# ----------------------------------------------------------------------------
def build_params(key, h, w, gain=(-1.0, 1.0), length=None, channels=1):
    k_gain, k_perm, k_start = jax.random.split(key, 3)

    # gain per "idx" slot (torch: (g0 - g1) * rand(h) + g1 when gain is a tuple)
    if isinstance(gain, float):
        gain_all = np.ones((h,), np.float32) * gain
    else:
        u = np.asarray(jax.random.uniform(k_gain, (h,), dtype=jnp.float32))
        gain_all = (gain[0] - gain[1]) * u + gain[1]

    # length per "idx" slot (default: full width w)
    length_val = w if not length else length
    length_all = np.full((h,), length_val, dtype=np.int32)

    # channel selection: randperm(h)[:channels]
    n_sel = h if not channels else channels
    perm = np.asarray(jax.random.permutation(k_perm, h))
    selected = perm[:n_sel]

    sensor_gain = np.zeros((h,), np.float32)   # gain * selection-mask folded together
    sensor_start = np.zeros((h,), np.int32)
    sensor_length = np.ones((h,), np.int32)    # 1 on unselected rows (harmless: gain=0)

    start_keys = jax.random.split(k_start, n_sel)
    for idx in range(n_sel):
        sensor = int(selected[idx])
        L = int(length_all[idx])
        start = int(np.asarray(jax.random.randint(start_keys[idx], (), 0, w - L + 1)))
        sensor_gain[sensor] = gain_all[idx]
        sensor_start[sensor] = start
        sensor_length[sensor] = L

    sensor_scale = (2.0 / sensor_length.astype(np.float32)).astype(np.float32)
    return (jnp.asarray(sensor_gain), jnp.asarray(sensor_start),
            jnp.asarray(sensor_length), jnp.asarray(sensor_scale))


def reference_jax(x, gain_eff, start, length, scale):
    W = x.shape[-1]
    col = jnp.arange(W, dtype=jnp.int32)[None, :]             # (1, W)
    rel = col - start[:, None]
    in_win = (rel >= 0) & (rel < length[:, None])
    rel_c = jnp.minimum(jnp.maximum(rel, 0), length[:, None] - 1).astype(jnp.float32)
    trend = gain_eff[:, None] * (jnp.exp(rel_c * scale[:, None]) - 1.0)
    add = jnp.where(in_win, trend, 0.0)
    return (x.astype(jnp.float32) + add[None]).astype(x.dtype)


if __name__ == "__main__":
    key = jax.random.PRNGKey(0)
    k_x, k_params = jax.random.split(key)

    # (batch, sensors, time); W multiple of 128 and H multiple of 8 -> lane/sublane dense.
    B, H, W = 4, 8, 256
    x = jax.random.normal(k_x, (B, H, W), dtype=jnp.float32)

    # Module defaults: probability=1.0 (unused in forward), gain=(-1.0, 1.0),
    # length=None -> full width, channels=1 -> one random sensor.
    gain_eff, start, length, scale = build_params(
        k_params, H, W, gain=(-1.0, 1.0), length=None, channels=1
    )

    out = exponential_trend_pallas(x, gain_eff, start, length, scale)
    out = jax.block_until_ready(out)

    ref = reference_jax(x, gain_eff, start, length, scale)
    assert out.shape == x.shape and out.dtype == x.dtype
    assert jnp.allclose(out, ref, atol=1e-5, rtol=1e-5)

    # Boundary check: batch not divisible by the batch tile (partial last block).
    x2 = jax.random.normal(jax.random.PRNGKey(1), (3, H, W), dtype=jnp.float32)
    out2 = jax.block_until_ready(
        exponential_trend_pallas(x2, gain_eff, start, length, scale, batch_tile=2)
    )
    ref2 = reference_jax(x2, gain_eff, start, length, scale)
    assert jnp.allclose(out2, ref2, atol=1e-5, rtol=1e-5)

    print("KERNEL_OK")
</pallas_src>

<mosaic_0001>
module attributes {stable_mosaic.version = 11 : i64} {
  func.func @exp_trend_kernel(%arg0: i32, %arg1: i32, %arg2: memref<8x1xf32, #tpu.memory_space<vmem>>, %arg3: memref<8x1xi32, #tpu.memory_space<vmem>>, %arg4: memref<8x1xi32, #tpu.memory_space<vmem>>, %arg5: memref<8x1xf32, #tpu.memory_space<vmem>>, %arg6: memref<2x8x256xf32, #tpu.memory_space<vmem>>, %arg7: memref<2x8x256xf32, #tpu.memory_space<vmem>>) attributes {dimension_semantics = [#tpu.dimension_semantics<parallel>, #tpu.dimension_semantics<parallel>], iteration_bounds = array<i64: 2, 1>, scalar_prefetch = 0 : i64, scratch_operands = 0 : i64, tpu.core_type = #tpu.core_type<tc>, window_params = [{pipeline_mode = #tpu.pipeline_mode<synchronous>, transform_indices = @transform_0, window_bounds = array<i64: 8, 1>}, {pipeline_mode = #tpu.pipeline_mode<synchronous>, transform_indices = @transform_1, window_bounds = array<i64: 8, 1>}, {pipeline_mode = #tpu.pipeline_mode<synchronous>, transform_indices = @transform_2, window_bounds = array<i64: 8, 1>}, {pipeline_mode = #tpu.pipeline_mode<synchronous>, transform_indices = @transform_3, window_bounds = array<i64: 8, 1>}, {transform_indices = @transform_4, window_bounds = array<i64: 2, 8, 256>}, {transform_indices = @transform_5, window_bounds = array<i64: 2, 8, 256>}]} {
    %c256_i32 = arith.constant 256 : i32
    %0 = arith.muli %arg1, %c256_i32 : i32
    %1 = tpu.iota {dimensions = array<i32: 1>} : vector<8x256xi32>
    %2 = vector.broadcast %0 : i32 to vector<8x256xi32>
    %3 = arith.addi %2, %1 : vector<8x256xi32>
    %c0 = arith.constant 0 : index
    %c0_0 = arith.constant 0 : index
    %4 = vector.load %arg3[%c0, %c0_0] : memref<8x1xi32, #tpu.memory_space<vmem>>, vector<8x1xi32>
    %c0_1 = arith.constant 0 : index
    %c0_2 = arith.constant 0 : index
    %5 = vector.load %arg4[%c0_1, %c0_2] : memref<8x1xi32, #tpu.memory_space<vmem>>, vector<8x1xi32>
    %6 = vector.broadcast %4 : vector<8x1xi32> to vector<8x256xi32>
    %7 = arith.subi %3, %6 : vector<8x256xi32>
    %c0_i32 = arith.constant 0 : i32
    %8 = vector.broadcast %c0_i32 : i32 to vector<8x256xi32>
    %9 = arith.cmpi sge, %7, %8 : vector<8x256xi32>
    %10 = vector.broadcast %5 : vector<8x1xi32> to vector<8x256xi32>
    %11 = arith.cmpi slt, %7, %10 : vector<8x256xi32>
    %12 = arith.andi %9, %11 : vector<8x256xi1>
    %c0_i32_3 = arith.constant 0 : i32
    %13 = vector.broadcast %c0_i32_3 : i32 to vector<8x256xi32>
    %14 = arith.maxsi %7, %13 : vector<8x256xi32>
    %c1_i32 = arith.constant 1 : i32
    %15 = vector.broadcast %c1_i32 : i32 to vector<8x1xi32>
    %16 = arith.subi %5, %15 : vector<8x1xi32>
    %17 = vector.broadcast %16 : vector<8x1xi32> to vector<8x256xi32>
    %18 = arith.minsi %14, %17 : vector<8x256xi32>
    %19 = arith.sitofp %18 : vector<8x256xi32> to vector<8x256xf32>
    %c0_4 = arith.constant 0 : index
    %c0_5 = arith.constant 0 : index
    %20 = vector.load %arg2[%c0_4, %c0_5] : memref<8x1xf32, #tpu.memory_space<vmem>>, vector<8x1xf32>
    %c0_6 = arith.constant 0 : index
    %c0_7 = arith.constant 0 : index
    %21 = vector.load %arg5[%c0_6, %c0_7] : memref<8x1xf32, #tpu.memory_space<vmem>>, vector<8x1xf32>
    %22 = vector.broadcast %21 : vector<8x1xf32> to vector<8x256xf32>
    %23 = arith.mulf %19, %22 : vector<8x256xf32>
    %24 = math.exp %23 : vector<8x256xf32>
    %cst = arith.constant 1.000000e+00 : f32
    %25 = vector.broadcast %cst : f32 to vector<8x256xf32>
    %26 = arith.subf %24, %25 : vector<8x256xf32>
    %27 = vector.broadcast %20 : vector<8x1xf32> to vector<8x256xf32>
    %28 = arith.mulf %27, %26 : vector<8x256xf32>
    %cst_8 = arith.constant 0.000000e+00 : f32
    %29 = vector.broadcast %cst_8 : f32 to vector<8x256xf32>
    %30 = arith.select %12, %28, %29 : vector<8x256xi1>, vector<8x256xf32>
    %c0_9 = arith.constant 0 : index
    %c0_10 = arith.constant 0 : index
    %c0_11 = arith.constant 0 : index
    %31 = vector.load %arg6[%c0_9, %c0_10, %c0_11] : memref<2x8x256xf32, #tpu.memory_space<vmem>>, vector<2x8x256xf32>
    %32 = vector.shape_cast %30 : vector<8x256xf32> to vector<1x8x256xf32>
    %33 = vector.broadcast %32 : vector<1x8x256xf32> to vector<2x8x256xf32>
    %34 = arith.addf %31, %33 : vector<2x8x256xf32>
    %c0_12 = arith.constant 0 : index
    %c0_13 = arith.constant 0 : index
    %c0_14 = arith.constant 0 : index
    %35 = vector.load %arg7[%c0_12, %c0_13, %c0_14] : memref<2x8x256xf32, #tpu.memory_space<vmem>>, vector<2x8x256xf32>
    tpu.vector_store %arg7[%c0_12, %c0_13, %c0_14], %34 {strides = array<i32>} : memref<2x8x256xf32, #tpu.memory_space<vmem>>, vector<2x8x256xf32>,
    return
  }
  func.func @transform_0(%arg0: i32, %arg1: i32) -> (i32, i32) {
    %c0_i32 = arith.constant 0 : i32
    %c0_i32_0 = arith.constant 0 : i32
    %c0_i32_1 = arith.constant 0 : i32
    return %c0_i32, %c0_i32_0 : i32, i32
  }
  func.func @transform_1(%arg0: i32, %arg1: i32) -> (i32, i32) {
    %c0_i32 = arith.constant 0 : i32
    %c0_i32_0 = arith.constant 0 : i32
    %c0_i32_1 = arith.constant 0 : i32
    return %c0_i32, %c0_i32_0 : i32, i32
  }
  func.func @transform_2(%arg0: i32, %arg1: i32) -> (i32, i32) {
    %c0_i32 = arith.constant 0 : i32
    %c0_i32_0 = arith.constant 0 : i32
    %c0_i32_1 = arith.constant 0 : i32
    return %c0_i32, %c0_i32_0 : i32, i32
  }
  func.func @transform_3(%arg0: i32, %arg1: i32) -> (i32, i32) {
    %c0_i32 = arith.constant 0 : i32
    %c0_i32_0 = arith.constant 0 : i32
    %c0_i32_1 = arith.constant 0 : i32
    return %c0_i32, %c0_i32_0 : i32, i32
  }
  func.func @transform_4(%arg0: i32, %arg1: i32) -> (i32, i32, i32) {
    %c0_i32 = arith.constant 0 : i32
    %c0_i32_0 = arith.constant 0 : i32
    return %arg0, %c0_i32, %arg1 : i32, i32, i32
  }
  func.func @transform_5(%arg0: i32, %arg1: i32) -> (i32, i32, i32) {
    %c0_i32 = arith.constant 0 : i32
    %c0_i32_0 = arith.constant 0 : i32
    return %arg0, %c0_i32, %arg1 : i32, i32, i32
  }
}

</mosaic_0001>

<llo_original>
// kernel: tpu_custom_call.1
$region0: #{tpu_custom_call.1}
  #allocation0 [shape = 'u32[]', space=smem, size = 0x4, offset = 0x4, fixed_abs, tag = 'smem constant byte address 0x4 - core index']
  #allocation1 [shape = 'u32[72,128]{1,0:T(1,128)}', space=vmem, size = 0x9000, scoped, tag = 'internal scratch']
  %s0 = inlined_call_operand.vmem [shape: f32[8,1], index: 0, kind: input, shape index: {}]
  %s1 = inlined_call_operand.vmem [shape: s32[8,1], index: 1, kind: input, shape index: {}]
  %s2 = inlined_call_operand.vmem [shape: s32[8,1], index: 2, kind: input, shape index: {}]
  %s3 = inlined_call_operand.vmem [shape: f32[8,1], index: 3, kind: input, shape index: {}]
  %s4 = inlined_call_operand.hbm [shape: f32[4,8,256], index: 4, kind: input, shape index: {}]
  %s5 = inlined_call_operand.hbm [shape: f32[4,8,256], index: 5, kind: output, shape index: {}]
  %s6 = sld [smem:[#allocation0]]
  $region57: #{tpu_custom_call.1} parent=0
    _
  %s8 = ssub.s32 1, %s6
  %s9 = scalar_select 0, %s8, %s6
  $region1: #{tpu_custom_call.1} parent=0
    #allocation2 [shape = 'u8[32768]{0}', space=vmem, size = 0x8000, scoped, tag = 'input window, operand 4']
    #allocation3 [shape = 's32[2]{0}', space=sflag, size = 0x8, scoped, tag = 'scoped memory for tpu_custom_call.1']
    #allocation4 [shape = 's32[2]{0}', space=sflag, size = 0x8, scoped, tag = 'scoped memory for tpu_custom_call.1']
    #allocation5 [shape = 'u8[32768]{0}', space=vmem, size = 0x8000, scoped, tag = 'output window, operand 0']
    %10 = vsyncpa [#allocation3], 0
    %s11 = scalar_lea.sflag [#allocation3], 1
    %12 = vsyncpa %s11, 0
    %13 = vsyncpa [#allocation4], 0
    %s14 = scalar_lea.sflag [#allocation4], 1
    %15 = vsyncpa %s14, 0
    loop: start=0, step=1, limit=4
    $region2: #{tpu_custom_call.1} parent=1 // loop_pre_header
      _
    $region3: #{tpu_custom_call.1} parent=1 // loop_header
      %s17 = sphi 0, %s21
      %p18 = scmp.ge.s32.totalorder %s17, 4
      %s24 = sphi 0, %s36
      %s25 = sphi 0, %s32
      %s26 = sphi 0, %s24
      %s27 = sphi 0, %s25
      %s28 = sphi 0, %s26
      %s29 = sphi 0, %s27
      %s37 = sphi 0, %s37
      %s39 = sphi 0, %s37
      %s40 = sphi 0, %s39
      %s54 = sphi 0, %s40
      %s58 = sphi 0, %s58
      %s60 = sphi 0, %s58
      %s61 = sphi 0, %s60
      %s75 = sphi 0, %s61
      %s79 = sphi 0, %s79
      %s81 = sphi 0, %s79
      %s82 = sphi 0, %s81
      %s96 = sphi 0, %s82
      %s100 = sphi 0, %s100
      %s102 = sphi 0, %s100
      %s103 = sphi 0, %s102
      %s117 = sphi 0, %s103
      %s125 = sphi 0, %s127
      %s128 = sphi 0, %s125
      %s129 = sphi 0, %s128
      %s145 = sphi 0, %s129
      %s153 = sphi 0, %s155
      %s156 = sphi 0, %s153
      %s157 = sphi 0, %s156
      %s173 = sphi 0, %s157
    $region4: #{tpu_custom_call.1} parent=1 // loop_header_branch
      %20 = sbr.rel (%p18) target = $region8
    $region5: #{tpu_custom_call.1} parent=1 // loop_body
      %s22 = ssub.s32 %s17, 1
      %s23 = ssub.s32 %s17, 2
      %s30 = sadd.s32 1, %s25
      %p31 = scmp.ge.s32.totalorder %s30, 1
      %s32 = scalar_select %p31, 0, %s30
      %s33 = sadd.s32 1, %s24
      %s34 = scalar_select %p31, %s33, %s24
      %p35 = scmp.ge.s32.totalorder %s34, 2
      %s36 = scalar_select %p35, 0, %s34
      %s38 = sadd.s32 %s37, 1
      %p41 = scmp.eq.s32.totalorder %s17, 1
      %p42 = scmp.ne.s32.totalorder %s37, %s39
      %p43 = scmp.eq.s32.totalorder %s17, 0
      %p44 = por %p42, %p43
      %p45 = scmp.ne.s32.totalorder %s37, %s39
      %p46 = scmp.eq.s32.totalorder %s22, 1
      %p47 = por %p45, %p46
      %p48 = scmp.ne.s32.totalorder %s39, %s40
      %p49 = scmp.eq.s32.totalorder %s22, 0
      %p50 = por %p48, %p49
      %p51 = scmp.ne.s32.totalorder %s39, %s40
      %p52 = scmp.eq.s32.totalorder %s23, 1
      %p53 = por %p51, %p52
      %p55 = scmp.ne.s32.totalorder %s40, %s54
      %p56 = scmp.eq.s32.totalorder %s23, 0
      %p57 = por %p55, %p56
      %s59 = sadd.s32 %s58, 1
      %p62 = scmp.eq.s32.totalorder %s17, 1
      %p63 = scmp.ne.s32.totalorder %s58, %s60
      %p64 = scmp.eq.s32.totalorder %s17, 0
      %p65 = por %p63, %p64
      %p66 = scmp.ne.s32.totalorder %s58, %s60
      %p67 = scmp.eq.s32.totalorder %s22, 1
      %p68 = por %p66, %p67
      %p69 = scmp.ne.s32.totalorder %s60, %s61
      %p70 = scmp.eq.s32.totalorder %s22, 0
      %p71 = por %p69, %p70
      %p72 = scmp.ne.s32.totalorder %s60, %s61
      %p73 = scmp.eq.s32.totalorder %s23, 1
      %p74 = por %p72, %p73
      %p76 = scmp.ne.s32.totalorder %s61, %s75
      %p77 = scmp.eq.s32.totalorder %s23, 0
      %p78 = por %p76, %p77
      %s80 = sadd.s32 %s79, 1
      %p83 = scmp.eq.s32.totalorder %s17, 1
      %p84 = scmp.ne.s32.totalorder %s79, %s81
      %p85 = scmp.eq.s32.totalorder %s17, 0
      %p86 = por %p84, %p85
      %p87 = scmp.ne.s32.totalorder %s79, %s81
      %p88 = scmp.eq.s32.totalorder %s22, 1
      %p89 = por %p87, %p88
      %p90 = scmp.ne.s32.totalorder %s81, %s82
      %p91 = scmp.eq.s32.totalorder %s22, 0
      %p92 = por %p90, %p91
      %p93 = scmp.ne.s32.totalorder %s81, %s82
      %p94 = scmp.eq.s32.totalorder %s23, 1
      %p95 = por %p93, %p94
      %p97 = scmp.ne.s32.totalorder %s82, %s96
      %p98 = scmp.eq.s32.totalorder %s23, 0
      %p99 = por %p97, %p98
      %s101 = sadd.s32 %s100, 1
      %p104 = scmp.eq.s32.totalorder %s17, 1
      %p105 = scmp.ne.s32.totalorder %s100, %s102
      %p106 = scmp.eq.s32.totalorder %s17, 0
      %p107 = por %p105, %p106
      %p108 = scmp.ne.s32.totalorder %s100, %s102
      %p109 = scmp.eq.s32.totalorder %s22, 1
      %p110 = por %p108, %p109
      %p111 = scmp.ne.s32.totalorder %s102, %s103
      %p112 = scmp.eq.s32.totalorder %s22, 0
      %p113 = por %p111, %p112
      %p114 = scmp.ne.s32.totalorder %s102, %s103
      %p115 = scmp.eq.s32.totalorder %s23, 1
      %p116 = por %p114, %p115
      %p118 = scmp.ne.s32.totalorder %s103, %s117
      %p119 = scmp.eq.s32.totalorder %s23, 0
      %p120 = por %p118, %p119
      %s121 = ssub.s32 %s24, %s36
      %s122 = ssub.s32 %s25, %s32
      %s123 = sor.u32 %s121, %s122
      %p124 = scmp.eq.s32.totalorder %s123, 0
      %s126 = sadd.s32 %s125, 1
      %s127 = scalar_select %p124, %s125, %s126
      %p130 = pneg %p124
      %p131 = scmp.eq.s32.totalorder %s17, 1
      %p132 = por %p130, %p131
      %p133 = scmp.ne.s32.totalorder %s125, %s128
      %p134 = scmp.eq.s32.totalorder %s17, 0
      %p135 = por %p133, %p134
      %p136 = scmp.ne.s32.totalorder %s125, %s128
      %p137 = scmp.eq.s32.totalorder %s22, 1
      %p138 = por %p136, %p137
      %p139 = scmp.ne.s32.totalorder %s128, %s129
      %p140 = scmp.eq.s32.totalorder %s22, 0
      %p141 = por %p139, %p140
      %p142 = scmp.ne.s32.totalorder %s128, %s129
      %p143 = scmp.eq.s32.totalorder %s23, 1
      %p144 = por %p142, %p143
      %p146 = scmp.ne.s32.totalorder %s129, %s145
      %p147 = scmp.eq.s32.totalorder %s23, 0
      %p148 = por %p146, %p147
      %s149 = ssub.s32 %s24, %s36
      %s150 = ssub.s32 %s25, %s32
      %s151 = sor.u32 %s149, %s150
      %p152 = scmp.eq.s32.totalorder %s151, 0
      %s154 = sadd.s32 %s153, 1
      %s155 = scalar_select %p152, %s153, %s154
      %p158 = pneg %p152
      %p159 = scmp.eq.s32.totalorder %s17, 1
      %p160 = por %p158, %p159
      %p161 = scmp.ne.s32.totalorder %s153, %s156
      %p162 = scmp.eq.s32.totalorder %s17, 0
      %p163 = por %p161, %p162
      %p164 = scmp.ne.s32.totalorder %s153, %s156
      %p165 = scmp.eq.s32.totalorder %s22, 1
      %p166 = por %p164, %p165
      %p167 = scmp.ne.s32.totalorder %s156, %s157
      %p168 = scmp.eq.s32.totalorder %s22, 0
      %p169 = por %p167, %p168
      %p170 = scmp.ne.s32.totalorder %s156, %s157
      %p171 = scmp.eq.s32.totalorder %s23, 1
      %p172 = por %p170, %p171
      %p174 = scmp.ne.s32.totalorder %s157, %s173
      %p175 = scmp.eq.s32.totalorder %s23, 0
      %p176 = por %p174, %p175
      %p177 = scmp.le.s32.totalorder 1, %s17
      %p178 = scmp.lt.s32.totalorder %s17, 3
      %p179 = pnand %p177, %p178
      %p180 = pneg %p179
      // Predicated region
      $region9: #{tpu_custom_call.1} parent=5 // pred_check
        _
      $region10: #{tpu_custom_call.1} parent=5 // pred_check_branch
        %182 = sbr.rel (%p179) target = $region12
      $region11: #{tpu_custom_call.1} parent=5 // pred_region
        %s183 = ssub.s32 %s17, 1
        // Predicated region
        $region13: #{tpu_custom_call.1} parent=11 // pred_check
          %p184 = pneg %p50
        $region14: #{tpu_custom_call.1} parent=11 // pred_check_branch
          %186 = sbr.rel (%p184) target = $region16
        $region15: #{tpu_custom_call.1} parent=11 // pred_region
          _
        $region16: #{tpu_custom_call.1} parent=11 // pred_fallthru
          _
        // Predicated region
        $region17: #{tpu_custom_call.1} parent=11 // pred_check
          %p187 = pneg %p71
        $region18: #{tpu_custom_call.1} parent=11 // pred_check_branch
          %189 = sbr.rel (%p187) target = $region20
        $region19: #{tpu_custom_call.1} parent=11 // pred_region
          _
        $region20: #{tpu_custom_call.1} parent=11 // pred_fallthru
          _
        // Predicated region
        $region21: #{tpu_custom_call.1} parent=11 // pred_check
          %p190 = pneg %p92
        $region22: #{tpu_custom_call.1} parent=11 // pred_check_branch
          %192 = sbr.rel (%p190) target = $region24
        $region23: #{tpu_custom_call.1} parent=11 // pred_region
          _
        $region24: #{tpu_custom_call.1} parent=11 // pred_fallthru
          _
        // Predicated region
        $region25: #{tpu_custom_call.1} parent=11 // pred_check
          %p193 = pneg %p113
        $region26: #{tpu_custom_call.1} parent=11 // pred_check_branch
          %195 = sbr.rel (%p193) target = $region28
        $region27: #{tpu_custom_call.1} parent=11 // pred_region
          _
        $region28: #{tpu_custom_call.1} parent=11 // pred_fallthru
          _
      $region12: #{tpu_custom_call.1} parent=5 // pred_fallthru
        _
      %p196 = scmp.lt.s32.totalorder %s17, 2
      // Predicated region
      $region29: #{tpu_custom_call.1} parent=5 // pred_check
        %p197 = pneg %p196
      $region30: #{tpu_custom_call.1} parent=5 // pred_check_branch
        %199 = sbr.rel (%p197) target = $region32
      $region31: #{tpu_custom_call.1} parent=5 // pred_region
        // Predicated region
        $region33: #{tpu_custom_call.1} parent=31 // pred_check
          %p200 = pneg %p135
        $region34: #{tpu_custom_call.1} parent=31 // pred_check_branch
          %202 = sbr.rel (%p200) target = $region36
        $region35: #{tpu_custom_call.1} parent=31 // pred_region
          %s203 = sand.u32 %s125, 1
          %s204 = scalar_lea.sflag [#allocation3], %s203
          %s205 = sand.u32 %s125, 1
          %s206 = smul.addr %s205, 32
          %s207 = scalar_lea.vmem [#allocation2], %s206
          %s208 = smul.u32 2, %s24
          %s209 = smul.u32 2, %s25
          %211 = vsyncadd %s204, 0
          %s212 = smul.addr %s208, 2
          %s213 = sadd.s32 %s209, %s212
          %s214 = smul.addr %s213, 8
          %s215 = scalar_lea.hbm %s4, %s214
          %s216 = sshll.u32 %s215, 4
          %s217 = int_to_ptr.hbm [resolvable:$true] %s216
          %s218 = sshll.u32 %s207, 4
          %s219 = int_to_ptr.vmem [resolvable:$true] %s218
          %224 = dma.hbm_to_vmem [thread:$0]  %s217, 512, %s219, %s204, 256, 256, 16
        $region36: #{tpu_custom_call.1} parent=31 // pred_fallthru
          _
      $region32: #{tpu_custom_call.1} parent=5 // pred_fallthru
        _
      %p225 = scmp.le.s32.totalorder 1, %s17
      %p226 = scmp.lt.s32.totalorder %s17, 3
      %p227 = pnand %p225, %p226
      %p228 = pneg %p227
      // Predicated region
      $region37: #{tpu_custom_call.1} parent=5 // pred_check
        _
      $region38: #{tpu_custom_call.1} parent=5 // pred_check_branch
        %230 = sbr.rel (%p227) target = $region40
      $region39: #{tpu_custom_call.1} parent=5 // pred_region
        %s231 = ssub.s32 %s17, 1
        %s232 = sand.u32 %s128, 1
        %s233 = scalar_lea.sflag [#allocation3], %s232
        %s234 = sand.u32 %s128, 1
        %s235 = smul.addr %s234, 32
        %s236 = scalar_lea.vmem [#allocation2], %s235
        // Predicated region
        $region41: #{tpu_custom_call.1} parent=39 // pred_check
          %p237 = pneg %p141
        $region42: #{tpu_custom_call.1} parent=39 // pred_check_branch
          %239 = sbr.rel (%p237) target = $region44
        $region43: #{tpu_custom_call.1} parent=39 // pred_region
          %241 = dma.done %s233, 512
        $region44: #{tpu_custom_call.1} parent=39 // pred_fallthru
          _
        %p242 = pneg %p50
        %p243 = pneg %p47
        %p244 = pneg %p71
        %p245 = pneg %p68
        %p246 = pneg %p92
        %p247 = pneg %p89
        %p248 = pneg %p113
        %p249 = pneg %p110
        %s250 = sand.u32 %s128, 1
        %s251 = scalar_lea.sflag [#allocation3], %s250
        %s252 = sand.u32 %s128, 1
        %s253 = smul.addr %s252, 32
        %s254 = scalar_lea.vmem [#allocation2], %s253
        %p255 = pneg %p141
        %p256 = pneg %p138
        %p257 = pneg %p169
        %p258 = pneg %p166
        %s259 = sand.u32 %s156, 1
        %s260 = scalar_lea.sflag [#allocation4], %s259
        %s261 = sand.u32 %s156, 1
        %s262 = smul.addr %s261, 32
        %s263 = scalar_lea.vmem [#allocation5], %s262
        %s264 = smul.u32 2, %s26
        %s265 = smul.u32 2, %s27
        %s266 = smul.u32 2, %s26
        %s267 = smul.u32 2, %s27
        %s268 = smul.u32 %s27, 256
        %v269 = vlaneseq
        %v270 = vand.u32 %v269, 127
        %v271 = vadd.s32 %v270, 128
        %v272 = vstv %s268
        %v273 = vadd.s32 %v272, %v270
        %v274 = vadd.s32 %v272, %v271
        %v275 = vld [vmem:[%s1] sm:$0xff]
        %v276 = vld [vmem:[%s2] sm:$0xff]
        %277 = vset.pattern.permute.xlu0 0
        %278 = vperm.xlu0 %277, %v275
        %v279 = vpop.permute.xlu0 %278
        %v280 = vsub.s32 %v273, %v279
        %v281 = vsub.s32 %v274, %v279
        %vm282 = vcmp.ge.s32.totalorder %v280, 0
        %vm283 = vcmp.ge.s32.totalorder %v281, 0
        %284 = vset.pattern.permute.xlu0 0
        %285 = vperm.xlu0 %284, %v276
        %v286 = vpop.permute.xlu0 %285
        %vm287 = vcmp.lt.s32.totalorder %v280, %v286
        %vm288 = vcmp.lt.s32.totalorder %v281, %v286
        %vm289 = vmand %vm282, %vm287
        %vm290 = vmand %vm283, %vm288
        %vm291 = vcmp.gt.s32.totalorder %v280, 0
        %v292 = vsel %vm291, %v280, 0
        %vm293 = vcmp.gt.s32.totalorder %v281, 0
        %v294 = vsel %vm293, %v281, 0
        %v295 = vsub.s32 %v276, 1
        %296 = vset.pattern.permute.xlu0 0
        %297 = vperm.xlu0 %296, %v295
        %v298 = vpop.permute.xlu0 %297
        %vm299 = vcmp.lt.s32.totalorder %v292, %v298
        %v300 = vsel %vm299, %v292, %v298
        %vm301 = vcmp.lt.s32.totalorder %v294, %v298
        %v302 = vsel %vm301, %v294, %v298
        %v303 = vcvt.s32.f32 %v300
        %v304 = vcvt.s32.f32 %v302
        %v305 = vld [vmem:[%s0] sm:$0xff]
        %v306 = vld [vmem:[%s3] sm:$0xff]
        %308 = vset.pattern.permute.xlu0 0
        %309 = vperm.xlu0 %308, %v306
        %v310 = vpop.permute.xlu0 %309
        %v312 = vmul.f32 %v303, %v310
        %v313 = vmul.f32 %v304, %v310
        %v314 = vmul.f32 %v312, 1.442695
        %v315 = vpow.pop %v314
        %v316 = vmul.f32 %v313, 1.442695
        %v317 = vpow.pop %v316
        %v318 = vsub.f32 %v315, 1.0
        %v319 = vsub.f32 %v317, 1.0
        %321 = vset.pattern.permute.xlu0 0
        %322 = vperm.xlu0 %321, %v305
        %v323 = vpop.permute.xlu0 %322
        %v325 = vmul.f32 %v323, %v318
        %v326 = vmul.f32 %v323, %v319
        %v327 = vsel %vm289, %v325, 0.0
        %v328 = vsel %vm290, %v326, 0.0
        %v329 = vld [vmem:[%s236] sm:$0xff]
        %v330 = vld [vmem:[%s236 + $0x8] sm:$0xff]
        %v331 = vld [vmem:[%s236 + $0x10] sm:$0xff]
        %v332 = vld [vmem:[%s236 + $0x18] sm:$0xff]
        %v333 = vadd.f32 %v329, %v327
        %v334 = vadd.f32 %v330, %v328
        %v335 = vadd.f32 %v331, %v327
        %v336 = vadd.f32 %v332, %v328
        %337 = vst [vmem:[%s263] sm:$0xff] %v333
        %338 = vst [vmem:[%s263 + $0x8] sm:$0xff] %v334
        %339 = vst [vmem:[%s263 + $0x10] sm:$0xff] %v335
        %340 = vst [vmem:[%s263 + $0x18] sm:$0xff] %v336
        %s341 = sand.u32 %s156, 1
        %s342 = scalar_lea.sflag [#allocation4], %s341
        %s343 = sand.u32 %s156, 1
        %s344 = smul.addr %s343, 32
        %s345 = scalar_lea.vmem [#allocation5], %s344
        // Predicated region
        $region45: #{tpu_custom_call.1} parent=39 // pred_check
          %p346 = pneg %p166
        $region46: #{tpu_custom_call.1} parent=39 // pred_check_branch
          %348 = sbr.rel (%p346) target = $region48
        $region47: #{tpu_custom_call.1} parent=39 // pred_region
          %s349 = smul.u32 2, %s26
          %s350 = smul.u32 2, %s27
          %352 = vsyncadd %s342, 0
          %s353 = smul.addr %s349, 2
          %s354 = sadd.s32 %s350, %s353
          %s355 = smul.addr %s354, 8
          %s356 = scalar_lea.hbm %s5, %s355
          %s357 = sshll.u32 %s345, 4
          %s358 = int_to_ptr.vmem [resolvable:$true] %s357
          %s359 = sshll.u32 %s356, 4
          %s360 = int_to_ptr.hbm [resolvable:$true] %s359
          %365 = dma.vmem_to_hbm [thread:$0]  %s358, 512, %s360, %s342, 256, 256, 16
        $region48: #{tpu_custom_call.1} parent=39 // pred_fallthru
          _
      $region40: #{tpu_custom_call.1} parent=5 // pred_fallthru
        _
      %p366 = scmp.le.s32.totalorder 2, %s17
      // Predicated region
      $region49: #{tpu_custom_call.1} parent=5 // pred_check
        %p367 = pneg %p366
      $region50: #{tpu_custom_call.1} parent=5 // pred_check_branch
        %369 = sbr.rel (%p367) target = $region52
      $region51: #{tpu_custom_call.1} parent=5 // pred_region
        %s370 = ssub.s32 %s17, 2
        // Predicated region
        $region53: #{tpu_custom_call.1} parent=51 // pred_check
          %p371 = pneg %p172
        $region54: #{tpu_custom_call.1} parent=51 // pred_check_branch
          %373 = sbr.rel (%p371) target = $region56
        $region55: #{tpu_custom_call.1} parent=51 // pred_region
          %s374 = sand.u32 %s157, 1
          %s375 = scalar_lea.sflag [#allocation4], %s374
          %s376 = sand.u32 %s157, 1
          %s377 = smul.addr %s376, 32
          %s378 = scalar_lea.vmem [#allocation5], %s377
          %380 = dma.done %s375, 512
        $region56: #{tpu_custom_call.1} parent=51 // pred_fallthru
          _
      $region52: #{tpu_custom_call.1} parent=5 // pred_fallthru
        _
    $region6: #{tpu_custom_call.1} parent=1 // loop_footer
      %s21 = sadd.s32 1, %s17
    $region7: #{tpu_custom_call.1} parent=1 // loop_footer_branch
      %16 = sbr.rel target = $region3
    $region8: #{tpu_custom_call.1} parent=1 // loop_exit
      _
    %381 = vsyncpa [#allocation3], 1
    %s382 = scalar_lea.sflag [#allocation3], 1
    %383 = vsyncpa %s382, 1
    %384 = vsyncpa [#allocation4], 1
    %s385 = scalar_lea.sflag [#allocation4], 1
    %386 = vsyncpa %s385, 1

</llo_original>
